<compile_context>
chip_gen: v5e
topology: v5e:2x2
jax: 0.10.0
libtpu: 0.0.40
codegen_flags: <defaults>
</compile_context>

<pallas_src>
import random
from functools import lru_cache

import numpy as np
import jax
import jax.numpy as jnp
from jax.experimental import pallas as pl
from jax.experimental.pallas import tpu as pltpu


def _timemask_kernel(tbl_ref, x_ref, m_ref, o_ref):
    # tbl_ref : SMEM (n_slots,) block-index table (only used by the index_maps).
    # x_ref/o_ref : (tf, tt) channel-0 tile (channel dim squeezed away).
    # m_ref  : (1, tt) keep-mask tile (float32; 0.0 => zero this time column).
    del tbl_ref
    keep = m_ref[...] != 0.0                      # (1, tt) -> broadcasts over F
    o_ref[...] = jnp.where(keep, x_ref[...], jnp.zeros_like(x_ref[...]))


def _sublane_align(dtype):
    # Native packed sublane tile: 8 rows for 4-byte, 16 for 2-byte, 32 for 1-byte.
    itemsize = np.dtype(dtype).itemsize
    return max(8, 32 // max(itemsize, 1))


@lru_cache(maxsize=None)
def _plan(shape, dtype, t_param, masks):
    """Build (jitted pallas call, time-tile size, #block-table slots)."""
    C, F, T = shape

    # --- time tiling: lane-dense 128-wide blocks (full T when T < 128) -------
    tt = 128 if T >= 128 else T
    n_tb = pl.cdiv(T, tt)

    # --- frequency tiling: prefer >= 2 blocks so v7x can use both TCs --------
    align = _sublane_align(dtype)
    if F <= align:
        tf = F
    else:
        tf = min(F, 512)
        if tf >= F:                       # would be a single block -> split it
            half = -(-F // 2)
            tf = ((half + align - 1) // align) * align
    n_fb = pl.cdiv(F, tf)

    # --- fixed slot count for the masked-block table (static -> 1 compile) ---
    per_span = min(n_tb, (t_param + tt - 1) // tt + 1) if t_param > 0 else 1
    n_slots = max(1, min(n_tb, masks * per_span))

    grid = (n_slots, n_fb)                # slot axis OUTER: mask tile reused

    img_spec = pl.BlockSpec((pl.Squeezed(), tf, tt),
                            lambda j, fi, tbl: (0, fi, tbl[j]))
    msk_spec = pl.BlockSpec((1, tt), lambda j, fi, tbl: (0, tbl[j]))

    call = pl.pallas_call(
        _timemask_kernel,
        out_shape=jax.ShapeDtypeStruct((C, F, T), dtype),
        grid_spec=pltpu.PrefetchScalarGridSpec(
            num_scalar_prefetch=1,
            grid=grid,
            in_specs=[img_spec, msk_spec],
            out_specs=img_spec,
        ),
        # Alias the (donated) full image onto the output: every block the grid
        # never touches (channels 1..C-1 and all unmasked time blocks of
        # channel 0) keeps its input bytes -> only the masked blocks move.
        # NOTE: input index 1 counts the scalar-prefetch table as call arg 0.
        input_output_aliases={1: 0},
        compiler_params=pltpu.CompilerParams(
            dimension_semantics=("arbitrary", "parallel")),
    )
    return jax.jit(call, donate_argnums=(1,)), tt, n_slots


class TimeMask:
    """JAX/Pallas port of the PyTorch TimeMask transform (no learnable params)."""

    def __init__(self, p=0.2, T=20, masks=8):
        self.p = p
        self.T = T
        self.masks = masks

    def __call__(self, img):
        # Host-side randomness, mirroring the PyTorch module's python `random`.
        if random.random() > self.p:
            return img
        len_spectro = int(img.shape[2])
        keep = np.ones((len_spectro,), dtype=np.float32)
        num_masks = random.randint(1, self.masks)
        for _ in range(num_masks):
            t = random.randint(0, self.T)
            t_zero = random.randint(0, len_spectro - t)
            if t == 0:
                continue
            keep[t_zero:t_zero + t] = 0.0

        masked_cols = np.flatnonzero(keep == 0.0)
        if masked_cols.size == 0:
            # Provable no-op (every drawn span had t == 0): skip the kernel.
            return img

        # Ensure a device-resident jax.Array so the donation/alias path kicks
        # in (a numpy input would force XLA to insert a defensive full copy).
        img = jnp.asarray(img)
        call, tt, n_slots = _plan(tuple(int(d) for d in img.shape),
                                  np.dtype(img.dtype), int(self.T),
                                  int(self.masks))

        # Table of the (few) time-block indices intersecting a masked span,
        # padded with the last real entry (idempotent re-writes) so the grid
        # shape stays static across calls.
        blocks = np.unique(masked_cols // tt).astype(np.int32)
        tbl = np.full((n_slots,), blocks[-1], dtype=np.int32)
        nb = min(blocks.size, n_slots)    # blocks.size <= n_slots by construction
        tbl[:nb] = blocks[:nb]

        mask = jnp.asarray(keep.reshape(1, len_spectro))
        # NOTE: img is donated (updated "in place" via aliasing), matching the
        # in-place mutation of the PyTorch module; the caller's buffer is
        # invalidated after this call.
        return call(jnp.asarray(tbl), img, mask)

    def __repr__(self) -> str:
        return f"{self.__class__.__name__}(p={self.p})(T={self.T})(Masks={self.masks})"


if __name__ == "__main__":
    # Deterministic inputs and deterministic host-side mask draws.
    key = jax.random.PRNGKey(0)
    C, F, T = 4, 16, 256                       # (channels, freq, time)
    x = jax.random.normal(key, (C, F, T), dtype=jnp.float32)
    x_np = np.array(x)                         # snapshot before x is donated

    tm = TimeMask(p=1.0, T=20, masks=8)        # p=1.0 so the demo always masks

    # Find a seed whose draws actually mask something, replicating the exact
    # RNG consumption order of TimeMask.__call__, and build the reference.
    chosen_seed, ref = None, None
    for seed in range(1000):
        random.seed(seed)
        r = x_np.copy()
        if random.random() > tm.p:
            continue
        num_masks = random.randint(1, tm.masks)
        masked_any = False
        for _ in range(num_masks):
            t = random.randint(0, tm.T)
            t_zero = random.randint(0, T - t)
            if t == 0:
                continue
            r[0][:, t_zero:t_zero + t] = 0
            masked_any = True
        if masked_any:
            chosen_seed, ref = seed, r
            break
    assert chosen_seed is not None, "no masking seed found"

    # Run the Pallas path with the same seed (identical RNG consumption).
    random.seed(chosen_seed)
    out = jax.block_until_ready(tm(x))

    np.testing.assert_allclose(np.array(out), ref, rtol=0, atol=0)
    print("KERNEL_OK")
</pallas_src>

<mosaic_0001>
module attributes {stable_mosaic.version = 11 : i64} {
  func.func @_timemask_kernel(%arg0: i32, %arg1: i32, %arg2: memref<2xi32, #tpu.memory_space<smem>>, %arg3: memref<1x8x128xf32, #tpu.memory_space<vmem>>, %arg4: memref<1x128xf32, #tpu.memory_space<vmem>>, %arg5: memref<1x8x128xf32, #tpu.memory_space<vmem>>) attributes {dimension_semantics = [#tpu.dimension_semantics<arbitrary>, #tpu.dimension_semantics<parallel>], iteration_bounds = array<i64: 2, 2>, scalar_prefetch = 1 : i64, scratch_operands = 0 : i64, tpu.core_type = #tpu.core_type<tc>, window_params = [{transform_indices = @transform_0, window_bounds = array<i64: 1, 8, 128>}, {transform_indices = @transform_1, window_bounds = array<i64: 1, 128>}, {transform_indices = @transform_2, window_bounds = array<i64: 1, 8, 128>}]} {
    %c0 = arith.constant 0 : index
    %c0_0 = arith.constant 0 : index
    %0 = vector.load %arg4[%c0, %c0_0] : memref<1x128xf32, #tpu.memory_space<vmem>>, vector<1x128xf32>
    %cst = arith.constant 0.000000e+00 : f32
    %1 = vector.broadcast %cst : f32 to vector<1x128xf32>
    %2 = arith.cmpf one, %0, %1 : vector<1x128xf32>
    %c0_1 = arith.constant 0 : index
    %c0_2 = arith.constant 0 : index
    %c0_3 = arith.constant 0 : index
    %3 = vector.load %arg3[%c0_1, %c0_2, %c0_3] : memref<1x8x128xf32, #tpu.memory_space<vmem>>, vector<1x8x128xf32>
    %4 = vector.shape_cast %3 : vector<1x8x128xf32> to vector<8x128xf32>
    %cst_4 = arith.constant 0.000000e+00 : f32
    %5 = vector.broadcast %cst_4 : f32 to vector<8x128xf32>
    %6 = vector.shape_cast %2 : vector<1x128xi1> to vector<1x128xi1>
    %7 = vector.broadcast %6 : vector<1x128xi1> to vector<8x128xi1>
    %8 = arith.select %7, %4, %5 : vector<8x128xi1>, vector<8x128xf32>
    %c0_5 = arith.constant 0 : index
    %c0_6 = arith.constant 0 : index
    %c0_7 = arith.constant 0 : index
    %9 = vector.load %arg5[%c0_5, %c0_6, %c0_7] : memref<1x8x128xf32, #tpu.memory_space<vmem>>, vector<1x8x128xf32>
    %10 = vector.shape_cast %9 : vector<1x8x128xf32> to vector<8x128xf32>
    %11 = vector.shape_cast %8 : vector<8x128xf32> to vector<1x8x128xf32>
    tpu.vector_store %arg5[%c0_5, %c0_6, %c0_7], %11 {strides = array<i32>} : memref<1x8x128xf32, #tpu.memory_space<vmem>>, vector<1x8x128xf32>,
    return
  }
  func.func @transform_0(%arg0: i32, %arg1: i32, %arg2: memref<2xi32, #tpu.memory_space<smem>>) -> (i32, i32, i32) {
    %0 = arith.index_cast %arg0 : i32 to index
    %1 = memref.load %arg2[%0] : memref<2xi32, #tpu.memory_space<smem>>
    %c0_i32 = arith.constant 0 : i32
    %c0_i32_0 = arith.constant 0 : i32
    return %c0_i32, %arg1, %1 : i32, i32, i32
  }
  func.func @transform_1(%arg0: i32, %arg1: i32, %arg2: memref<2xi32, #tpu.memory_space<smem>>) -> (i32, i32) {
    %0 = arith.index_cast %arg0 : i32 to index
    %1 = memref.load %arg2[%0] : memref<2xi32, #tpu.memory_space<smem>>
    %c0_i32 = arith.constant 0 : i32
    %c0_i32_0 = arith.constant 0 : i32
    return %c0_i32, %1 : i32, i32
  }
  func.func @transform_2(%arg0: i32, %arg1: i32, %arg2: memref<2xi32, #tpu.memory_space<smem>>) -> (i32, i32, i32) {
    %0 = arith.index_cast %arg0 : i32 to index
    %1 = memref.load %arg2[%0] : memref<2xi32, #tpu.memory_space<smem>>
    %c0_i32 = arith.constant 0 : i32
    %c0_i32_0 = arith.constant 0 : i32
    return %c0_i32, %arg1, %1 : i32, i32, i32
  }
}

</mosaic_0001>

<llo_original>
// kernel: tpu_custom_call.1
$region0: #{tpu_custom_call.1}
  #allocation0 [shape = 'u32[]', space=smem, size = 0x4, offset = 0x4, fixed_abs, tag = 'smem constant byte address 0x4 - core index']
  #allocation1 [shape = 'u32[72,128]{1,0:T(1,128)}', space=vmem, size = 0x9000, scoped, tag = 'internal scratch']
  #allocation2 [shape = 's32[1]{0}', space=sflag, size = 0x4, scoped, tag = 'scoped memory for tpu_custom_call.1']
  #allocation3 [shape = 'u8[512]{0}', space=smem, size = 0x200, scoped, tag = 'prefetched SMEM operand 0']
  %s0 = inlined_call_operand.hbm [shape: s32[2], index: 0, kind: input, shape index: {}]
  %s1 = inlined_call_operand.hbm [shape: f32[4,16,256], index: 1, kind: input, shape index: {}, may-alias: {1,3}]
  %s2 = inlined_call_operand.hbm [shape: f32[1,256], index: 2, kind: input, shape index: {}]
  %s3 = inlined_call_operand.hbm [shape: f32[4,16,256], index: 3, kind: output, shape index: {}, may-alias: {1,3}]
  %s4 = sld [smem:[#allocation0]]
  $region49: #{tpu_custom_call.1} parent=0
    _
  %s6 = ssub.s32 1, %s4
  %s7 = scalar_select 0, %s6, %s4
  %s9 = sshll.u32 %s0, 4
  %s10 = int_to_ptr.hbm [resolvable:$true] %s9
  %12 = dma.hbm_to_smem %s10, 16, [#allocation3], [#allocation2]
  %14 = dma.done [#allocation2], 16
  %15 = sfence
  $region1: #{tpu_custom_call.1} parent=0
    #allocation4 [shape = 'u8[8192]{0}', space=vmem, size = 0x2000, scoped, tag = 'input window, operand 1']
    #allocation5 [shape = 's32[2]{0}', space=sflag, size = 0x8, scoped, tag = 'scoped memory for tpu_custom_call.1']
    #allocation6 [shape = 's32[2]{0}', space=sflag, size = 0x8, scoped, tag = 'scoped memory for tpu_custom_call.1']
    #allocation7 [shape = 'u8[1024]{0}', space=vmem, size = 0x400, scoped, tag = 'input window, operand 2']
    #allocation8 [shape = 's32[2]{0}', space=sflag, size = 0x8, scoped, tag = 'scoped memory for tpu_custom_call.1']
    #allocation9 [shape = 'u8[8192]{0}', space=vmem, size = 0x2000, scoped, tag = 'output window, operand 0']
    %16 = vsyncpa [#allocation5], 0
    %s17 = scalar_lea.sflag [#allocation5], 1
    %18 = vsyncpa %s17, 0
    %19 = vsyncpa [#allocation8], 0
    %s20 = scalar_lea.sflag [#allocation8], 1
    %21 = vsyncpa %s20, 0
    %22 = vsyncpa [#allocation6], 0
    %s23 = scalar_lea.sflag [#allocation6], 1
    %24 = vsyncpa %s23, 0
    loop: start=0, step=1, limit=6
    $region2: #{tpu_custom_call.1} parent=1 // loop_pre_header
      _
    $region3: #{tpu_custom_call.1} parent=1 // loop_header
      %s26 = sphi 0, %s30
      %p27 = scmp.ge.s32.totalorder %s26, 6
      %s33 = sphi 0, %s45
      %s34 = sphi 0, %s41
      %s35 = sphi 0, %s33
      %s36 = sphi 0, %s34
      %s37 = sphi 0, %s35
      %s38 = sphi 0, %s36
      %s52 = sphi 0, %s54
      %s55 = sphi 0, %s52
      %s56 = sphi 0, %s55
      %s72 = sphi 0, %s56
      %s80 = sphi 0, %s82
      %s83 = sphi 0, %s80
      %s84 = sphi 0, %s83
      %s100 = sphi 0, %s84
      %s110 = sphi 0, %s112
      %s113 = sphi 0, %s110
      %s114 = sphi 0, %s113
      %s130 = sphi 0, %s114
    $region4: #{tpu_custom_call.1} parent=1 // loop_header_branch
      %29 = sbr.rel (%p27) target = $region8
    $region5: #{tpu_custom_call.1} parent=1 // loop_body
      %s31 = ssub.s32 %s26, 1
      %s32 = ssub.s32 %s26, 2
      %s39 = sadd.s32 1, %s34
      %p40 = scmp.ge.s32.totalorder %s39, 2
      %s41 = scalar_select %p40, 0, %s39
      %s42 = sadd.s32 1, %s33
      %s43 = scalar_select %p40, %s42, %s33
      %p44 = scmp.ge.s32.totalorder %s43, 2
      %s45 = scalar_select %p44, 0, %s43
      %s46 = sld [smem:[#allocation3 + %s33]]
      %s47 = sld [smem:[#allocation3 + %s45]]
      %s48 = ssub.s32 %s34, %s41
      %s49 = ssub.s32 %s46, %s47
      %s50 = sor.u32 %s48, %s49
      %p51 = scmp.eq.s32.totalorder %s50, 0
      %s53 = sadd.s32 %s52, 1
      %s54 = scalar_select %p51, %s52, %s53
      %p57 = pneg %p51
      %p58 = scmp.eq.s32.totalorder %s26, 3
      %p59 = por %p57, %p58
      %p60 = scmp.ne.s32.totalorder %s52, %s55
      %p61 = scmp.eq.s32.totalorder %s26, 0
      %p62 = por %p60, %p61
      %p63 = scmp.ne.s32.totalorder %s52, %s55
      %p64 = scmp.eq.s32.totalorder %s31, 3
      %p65 = por %p63, %p64
      %p66 = scmp.ne.s32.totalorder %s55, %s56
      %p67 = scmp.eq.s32.totalorder %s31, 0
      %p68 = por %p66, %p67
      %p69 = scmp.ne.s32.totalorder %s55, %s56
      %p70 = scmp.eq.s32.totalorder %s32, 3
      %p71 = por %p69, %p70
      %p73 = scmp.ne.s32.totalorder %s56, %s72
      %p74 = scmp.eq.s32.totalorder %s32, 0
      %p75 = por %p73, %p74
      %s76 = sld [smem:[#allocation3 + %s33]]
      %s77 = sld [smem:[#allocation3 + %s45]]
      %s78 = ssub.s32 %s76, %s77
      %p79 = scmp.eq.s32.totalorder %s78, 0
      %s81 = sadd.s32 %s80, 1
      %s82 = scalar_select %p79, %s80, %s81
      %p85 = pneg %p79
      %p86 = scmp.eq.s32.totalorder %s26, 3
      %p87 = por %p85, %p86
      %p88 = scmp.ne.s32.totalorder %s80, %s83
      %p89 = scmp.eq.s32.totalorder %s26, 0
      %p90 = por %p88, %p89
      %p91 = scmp.ne.s32.totalorder %s80, %s83
      %p92 = scmp.eq.s32.totalorder %s31, 3
      %p93 = por %p91, %p92
      %p94 = scmp.ne.s32.totalorder %s83, %s84
      %p95 = scmp.eq.s32.totalorder %s31, 0
      %p96 = por %p94, %p95
      %p97 = scmp.ne.s32.totalorder %s83, %s84
      %p98 = scmp.eq.s32.totalorder %s32, 3
      %p99 = por %p97, %p98
      %p101 = scmp.ne.s32.totalorder %s84, %s100
      %p102 = scmp.eq.s32.totalorder %s32, 0
      %p103 = por %p101, %p102
      %s104 = sld [smem:[#allocation3 + %s33]]
      %s105 = sld [smem:[#allocation3 + %s45]]
      %s106 = ssub.s32 %s34, %s41
      %s107 = ssub.s32 %s104, %s105
      %s108 = sor.u32 %s106, %s107
      %p109 = scmp.eq.s32.totalorder %s108, 0
      %s111 = sadd.s32 %s110, 1
      %s112 = scalar_select %p109, %s110, %s111
      %p115 = pneg %p109
      %p116 = scmp.eq.s32.totalorder %s26, 3
      %p117 = por %p115, %p116
      %p118 = scmp.ne.s32.totalorder %s110, %s113
      %p119 = scmp.eq.s32.totalorder %s26, 0
      %p120 = por %p118, %p119
      %p121 = scmp.ne.s32.totalorder %s110, %s113
      %p122 = scmp.eq.s32.totalorder %s31, 3
      %p123 = por %p121, %p122
      %p124 = scmp.ne.s32.totalorder %s113, %s114
      %p125 = scmp.eq.s32.totalorder %s31, 0
      %p126 = por %p124, %p125
      %p127 = scmp.ne.s32.totalorder %s113, %s114
      %p128 = scmp.eq.s32.totalorder %s32, 3
      %p129 = por %p127, %p128
      %p131 = scmp.ne.s32.totalorder %s114, %s130
      %p132 = scmp.eq.s32.totalorder %s32, 0
      %p133 = por %p131, %p132
      %p134 = scmp.le.s32.totalorder 1, %s26
      %p135 = scmp.lt.s32.totalorder %s26, 5
      %p136 = pnand %p134, %p135
      %p137 = pneg %p136
      // Predicated region
      $region9: #{tpu_custom_call.1} parent=5 // pred_check
        _
      $region10: #{tpu_custom_call.1} parent=5 // pred_check_branch
        %139 = sbr.rel (%p136) target = $region12
      $region11: #{tpu_custom_call.1} parent=5 // pred_region
        %s140 = ssub.s32 %s26, 1
      $region12: #{tpu_custom_call.1} parent=5 // pred_fallthru
        _
      %p141 = scmp.lt.s32.totalorder %s26, 4
      // Predicated region
      $region13: #{tpu_custom_call.1} parent=5 // pred_check
        %p142 = pneg %p141
      $region14: #{tpu_custom_call.1} parent=5 // pred_check_branch
        %144 = sbr.rel (%p142) target = $region16
      $region15: #{tpu_custom_call.1} parent=5 // pred_region
        // Predicated region
        $region17: #{tpu_custom_call.1} parent=15 // pred_check
          %p145 = pneg %p62
        $region18: #{tpu_custom_call.1} parent=15 // pred_check_branch
          %147 = sbr.rel (%p145) target = $region20
        $region19: #{tpu_custom_call.1} parent=15 // pred_region
          %s148 = sand.u32 %s52, 1
          %s149 = scalar_lea.sflag [#allocation5], %s148
          %s150 = sand.u32 %s52, 1
          %s151 = smul.addr %s150, 8
          %s152 = scalar_lea.vmem [#allocation4], %s151
          %s153 = sld [smem:[#allocation3 + %s33]]
          %155 = vsyncadd %s149, 0
          %s156 = smul.addr %s34, 2
          %s157 = sadd.s32 %s153, %s156
          %s158 = smul.addr %s157, 8
          %s159 = scalar_lea.hbm %s1, %s158
          %s161 = sshll.u32 %s159, 4
          %s162 = int_to_ptr.hbm [resolvable:$true] %s161
          %s163 = sshll.u32 %s152, 4
          %s164 = int_to_ptr.vmem [resolvable:$true] %s163
          %166 = dma.hbm_to_vmem [thread:$0]  %s162, 128, %s164, %s149
        $region20: #{tpu_custom_call.1} parent=15 // pred_fallthru
          _
        // Predicated region
        $region21: #{tpu_custom_call.1} parent=15 // pred_check
          %p167 = pneg %p90
        $region22: #{tpu_custom_call.1} parent=15 // pred_check_branch
          %169 = sbr.rel (%p167) target = $region24
        $region23: #{tpu_custom_call.1} parent=15 // pred_region
          %s170 = sand.u32 %s80, 1
          %s171 = scalar_lea.sflag [#allocation8], %s170
          %s172 = sand.u32 %s80, 1
          %s173 = scalar_lea.vmem [#allocation7], %s172
          %s174 = sld [smem:[#allocation3 + %s33]]
          %176 = vsyncadd %s171, 0
          %s177 = scalar_lea.hbm %s2, %s174
          %s179 = sshll.u32 %s177, 4
          %s180 = int_to_ptr.hbm [resolvable:$true] %s179
          %s181 = sshll.u32 %s173, 4
          %s182 = int_to_ptr.vmem [resolvable:$true] %s181
          %184 = dma.hbm_to_vmem [thread:$0]  %s180, 16, %s182, %s171
        $region24: #{tpu_custom_call.1} parent=15 // pred_fallthru
          _
      $region16: #{tpu_custom_call.1} parent=5 // pred_fallthru
        _
      %p185 = scmp.le.s32.totalorder 1, %s26
      %p186 = scmp.lt.s32.totalorder %s26, 5
      %p187 = pnand %p185, %p186
      %p188 = pneg %p187
      // Predicated region
      $region25: #{tpu_custom_call.1} parent=5 // pred_check
        _
      $region26: #{tpu_custom_call.1} parent=5 // pred_check_branch
        %190 = sbr.rel (%p187) target = $region28
      $region27: #{tpu_custom_call.1} parent=5 // pred_region
        %s191 = ssub.s32 %s26, 1
        %s192 = sand.u32 %s55, 1
        %s193 = scalar_lea.sflag [#allocation5], %s192
        %s194 = sand.u32 %s55, 1
        %s195 = smul.addr %s194, 8
        %s196 = scalar_lea.vmem [#allocation4], %s195
        // Predicated region
        $region29: #{tpu_custom_call.1} parent=27 // pred_check
          %p197 = pneg %p68
        $region30: #{tpu_custom_call.1} parent=27 // pred_check_branch
          %199 = sbr.rel (%p197) target = $region32
        $region31: #{tpu_custom_call.1} parent=27 // pred_region
          %201 = dma.done %s193, 128
        $region32: #{tpu_custom_call.1} parent=27 // pred_fallthru
          _
        %s202 = sand.u32 %s83, 1
        %s203 = scalar_lea.sflag [#allocation8], %s202
        %s204 = sand.u32 %s83, 1
        %s205 = scalar_lea.vmem [#allocation7], %s204
        // Predicated region
        $region33: #{tpu_custom_call.1} parent=27 // pred_check
          %p206 = pneg %p96
        $region34: #{tpu_custom_call.1} parent=27 // pred_check_branch
          %208 = sbr.rel (%p206) target = $region36
        $region35: #{tpu_custom_call.1} parent=27 // pred_region
          %210 = dma.done %s203, 16
        $region36: #{tpu_custom_call.1} parent=27 // pred_fallthru
          _
        %s211 = sand.u32 %s55, 1
        %s212 = scalar_lea.sflag [#allocation5], %s211
        %s213 = sand.u32 %s55, 1
        %s214 = smul.addr %s213, 8
        %s215 = scalar_lea.vmem [#allocation4], %s214
        %p216 = pneg %p68
        %p217 = pneg %p65
        %s218 = sand.u32 %s83, 1
        %s219 = scalar_lea.sflag [#allocation8], %s218
        %s220 = sand.u32 %s83, 1
        %s221 = scalar_lea.vmem [#allocation7], %s220
        %p222 = pneg %p96
        %p223 = pneg %p93
        %p224 = pneg %p126
        %p225 = pneg %p123
        %s226 = sand.u32 %s113, 1
        %s227 = scalar_lea.sflag [#allocation6], %s226
        %s228 = sand.u32 %s113, 1
        %s229 = smul.addr %s228, 8
        %s230 = scalar_lea.vmem [#allocation9], %s229
        %s231 = sld [smem:[#allocation3 + %s35]]
        %s232 = sld [smem:[#allocation3 + %s35]]
        %s233 = sld [smem:[#allocation3 + %s35]]
        %v234 = vld [vmem:[%s205] sm:$0x1]
        %vm235 = vcmp.ne.f32.partialorder %v234, 0.0
        %v236 = vld [vmem:[%s196] sm:$0xff]
        %v237 = vsel %vm235, 1, 0
        %v238 = vperm.slane %v237, 0
        %vm239 = vcmp.eq.s32.totalorder %v238, 1
        %v240 = vsel %vm239, %v236, 0.0
        %241 = vst [vmem:[%s230] sm:$0xff] %v240
        %s242 = sand.u32 %s113, 1
        %s243 = scalar_lea.sflag [#allocation6], %s242
        %s244 = sand.u32 %s113, 1
        %s245 = smul.addr %s244, 8
        %s246 = scalar_lea.vmem [#allocation9], %s245
        // Predicated region
        $region37: #{tpu_custom_call.1} parent=27 // pred_check
          %p247 = pneg %p123
        $region38: #{tpu_custom_call.1} parent=27 // pred_check_branch
          %249 = sbr.rel (%p247) target = $region40
        $region39: #{tpu_custom_call.1} parent=27 // pred_region
          %s250 = sld [smem:[#allocation3 + %s35]]
          %252 = vsyncadd %s243, 0
          %s253 = smul.addr %s36, 2
          %s254 = sadd.s32 %s250, %s253
          %s255 = smul.addr %s254, 8
          %s256 = scalar_lea.hbm %s3, %s255
          %s258 = sshll.u32 %s246, 4
          %s259 = int_to_ptr.vmem [resolvable:$true] %s258
          %s260 = sshll.u32 %s256, 4
          %s261 = int_to_ptr.hbm [resolvable:$true] %s260
          %263 = dma.vmem_to_hbm [thread:$0]  %s259, 128, %s261, %s243
        $region40: #{tpu_custom_call.1} parent=27 // pred_fallthru
          _
      $region28: #{tpu_custom_call.1} parent=5 // pred_fallthru
        _
      %p264 = scmp.le.s32.totalorder 2, %s26
      // Predicated region
      $region41: #{tpu_custom_call.1} parent=5 // pred_check
        %p265 = pneg %p264
      $region42: #{tpu_custom_call.1} parent=5 // pred_check_branch
        %267 = sbr.rel (%p265) target = $region44
      $region43: #{tpu_custom_call.1} parent=5 // pred_region
        %s268 = ssub.s32 %s26, 2
        // Predicated region
        $region45: #{tpu_custom_call.1} parent=43 // pred_check
          %p269 = pneg %p129
        $region46: #{tpu_custom_call.1} parent=43 // pred_check_branch
          %271 = sbr.rel (%p269) target = $region48
        $region47: #{tpu_custom_call.1} parent=43 // pred_region
          %s272 = sand.u32 %s114, 1
          %s273 = scalar_lea.sflag [#allocation6], %s272
          %s274 = sand.u32 %s114, 1
          %s275 = smul.addr %s274, 8
          %s276 = scalar_lea.vmem [#allocation9], %s275
          %278 = dma.done %s273, 128
        $region48: #{tpu_custom_call.1} parent=43 // pred_fallthru
          _
      $region44: #{tpu_custom_call.1} parent=5 // pred_fallthru
        _
    $region6: #{tpu_custom_call.1} parent=1 // loop_footer
      %s30 = sadd.s32 1, %s26
    $region7: #{tpu_custom_call.1} parent=1 // loop_footer_branch
      %25 = sbr.rel target = $region3
    $region8: #{tpu_custom_call.1} parent=1 // loop_exit
      _
    %279 = vsyncpa [#allocation5], 1
    %s280 = scalar_lea.sflag [#allocation5], 1
    %281 = vsyncpa %s280, 1
    %282 = vsyncpa [#allocation8], 1
    %s283 = scalar_lea.sflag [#allocation8], 1
    %284 = vsyncpa %s283, 1
    %285 = vsyncpa [#allocation6], 1
    %s286 = scalar_lea.sflag [#allocation6], 1
    %287 = vsyncpa %s286, 1

</llo_original>
